<compile_context>
chip_gen: v7x
topology: tpu7x:2x2x1
jax: 0.10.0
libtpu: 0.0.40
codegen_flags: <defaults>
</compile_context>

<pallas_src>
import math
import functools
from typing import NamedTuple, Any

import jax
import jax.numpy as jnp
from jax.experimental import pallas as pl
from jax.experimental.pallas import tpu as pltpu


# ----------------------------------------------------------------------------- kernel
def ffn_kernel(x_ref, w1_ref, b1_ref, w2_ref, b2_ref, o_ref, acc_ref):
    f = pl.program_id(1)

    # linear1 chunk: (tile_m, H) @ (H, tile_f) -> f32 on the MXU
    h = jnp.dot(x_ref[...], w1_ref[...], preferred_element_type=jnp.float32)
    h = jnp.maximum(h + b1_ref[...], 0.0)                  # bias + ReLU (VPU)
    # Dropout: identity at inference (module.eval()).

    # linear2 chunk; cast h to the weight compute dtype (bf16 by default) so the
    # second matmul also runs at the native MXU rate (accumulation stays f32).
    contrib = jnp.dot(h.astype(w2_ref.dtype), w2_ref[...],
                      preferred_element_type=jnp.float32)

    @pl.when(f == 0)
    def _first():                      # assign: saves a zero write + read per m tile
        acc_ref[...] = contrib

    @pl.when(f != 0)
    def _accum():
        acc_ref[...] += contrib

    @pl.when(f == pl.num_programs(1) - 1)
    def _finish():
        o_ref[...] = (acc_ref[...] + b2_ref[...]).astype(o_ref.dtype)


# ----------------------------------------------------------------------------- helpers
def _round_up(v, n):
    return ((v + n - 1) // n) * n


def _cdiv(a, b):
    return (a + b - 1) // b


def _default_vmem_limit():
    """Generation-aware scoped-VMEM limit with headroom for compiler scratch."""
    cap = 128 * 1024 * 1024
    try:
        info = pltpu.get_tpu_info()
        cap = int(getattr(info, "vmem_capacity_bytes", cap))
    except Exception:
        pass
    # ~80% of physical VMEM, capped at 110 MiB: ~51 MiB on v7x (64 MiB VMEM),
    # ~102 MiB on v5e/v6e (128 MiB VMEM).
    return int(min(cap * 0.8, 110 * 1024 * 1024))


class FFNConfig(NamedTuple):
    hidden: int
    h_pad: int
    f_pad: int
    tile_f: int
    compute_dtype: Any
    vmem_limit_bytes: int


def prepare_ffn_params(w1, b1, w2, b2, *, compute_dtype=jnp.bfloat16,
                       tile_f=None, vmem_limit_bytes=None):
    """One-time parameter prep: pad to lane-dense 128 multiples and cast to the
    compute dtype OUTSIDE the per-call hot path."""
    hidden, filt = w1.shape
    assert w2.shape == (filt, hidden)

    if vmem_limit_bytes is None:
        vmem_limit_bytes = _default_vmem_limit()
    cd = jnp.dtype(compute_dtype).itemsize

    h_pad = _round_up(hidden, 128)
    f_pad = _round_up(filt, 128)

    if tile_f is None:
        # Double-buffered W1+W2 chunks (4 * h_pad * tile_f * cd bytes) should use
        # at most ~40% of the budget; tile_m (the high-leverage dim) gets the rest.
        tile_f = int((0.4 * vmem_limit_bytes) // max(1, 4 * h_pad * cd))
        tile_f = max(128, min(1024, tile_f))
    tile_f = min(_round_up(tile_f, 128), f_pad)
    f_pad = _round_up(f_pad, tile_f)

    w1p = w1.astype(compute_dtype)
    w2p = w2.astype(compute_dtype)
    if h_pad > hidden or f_pad > filt:
        w1p = jnp.pad(w1p, ((0, h_pad - hidden), (0, f_pad - filt)))
        w2p = jnp.pad(w2p, ((0, f_pad - filt), (0, h_pad - hidden)))

    b1p = b1.astype(jnp.float32)
    b2p = b2.astype(jnp.float32)
    if f_pad > filt:
        b1p = jnp.pad(b1p, (0, f_pad - filt))
    if h_pad > hidden:
        b2p = jnp.pad(b2p, (0, h_pad - hidden))
    b1p = b1p.reshape(1, f_pad)
    b2p = b2p.reshape(1, h_pad)

    cfg = FFNConfig(hidden=hidden, h_pad=h_pad, f_pad=f_pad, tile_f=tile_f,
                    compute_dtype=compute_dtype, vmem_limit_bytes=int(vmem_limit_bytes))
    return (w1p, b1p, w2p, b2p), cfg


# ----------------------------------------------------------------------------- forward
@functools.partial(jax.jit, static_argnames=("cfg", "tile_m"))
def ffn_forward(x, w1p, b1p, w2p, b2p, *, cfg: FFNConfig, tile_m=None):
    """Fused FFN forward. x: (..., hidden) -> (..., hidden)."""
    orig_shape = x.shape
    out_dtype = x.dtype
    hidden, h_pad, f_pad, tile_f = cfg.hidden, cfg.h_pad, cfg.f_pad, cfg.tile_f
    cd = jnp.dtype(cfg.compute_dtype).itemsize
    od = jnp.dtype(out_dtype).itemsize

    x2d = x.reshape(-1, hidden)
    m = x2d.shape[0]

    # --- tile_m from the remaining VMEM budget, balanced against M ------------
    if tile_m is None:
        weight_bytes = 4 * h_pad * tile_f * cd + 2 * (tile_f + h_pad) * 4
        # per-row VMEM: x (2 bufs) + out (2 bufs) + f32 acc + h intermediate (+cast)
        row_bytes = h_pad * (2 * cd + 2 * od + 4) + tile_f * (4 + cd)
        budget = int(cfg.vmem_limit_bytes * 0.9) - weight_bytes
        tile_m_cap = max(128, min(1024, (budget // row_bytes) // 128 * 128))
        # balance tiles so awkward M doesn't waste almost a full padded tile
        n_tiles = _cdiv(m, tile_m_cap)
        tile_m = min(_round_up(_cdiv(m, n_tiles), 16), _round_up(tile_m_cap, 16))
    else:
        tile_m = _round_up(tile_m, 16)
    m_pad = _round_up(m, tile_m)

    grid = (m_pad // tile_m, f_pad // tile_f)

    # --- pad x only (weights already prepared); skip no-op pads ---------------
    xp = x2d.astype(cfg.compute_dtype)
    if m_pad > m or h_pad > hidden:
        xp = jnp.pad(xp, ((0, m_pad - m), (0, h_pad - hidden)))

    n_m_tiles = grid[0]
    flops = 4 * m_pad * h_pad * f_pad                       # two matmuls
    bytes_accessed = int(m_pad * h_pad * cd                 # x
                         + 2 * h_pad * f_pad * cd * n_m_tiles  # W1+W2 re-streamed
                         + (f_pad + h_pad) * 4              # biases
                         + m_pad * h_pad * od)               # output

    out = pl.pallas_call(
        ffn_kernel,
        out_shape=jax.ShapeDtypeStruct((m_pad, h_pad), out_dtype),
        grid_spec=pltpu.PrefetchScalarGridSpec(
            num_scalar_prefetch=0,
            grid=grid,
            in_specs=[
                pl.BlockSpec((tile_m, h_pad), lambda i, f: (i, 0)),   # x tile
                pl.BlockSpec((h_pad, tile_f), lambda i, f: (0, f)),   # W1 chunk
                pl.BlockSpec((1, tile_f), lambda i, f: (0, f)),       # b1 chunk
                pl.BlockSpec((tile_f, h_pad), lambda i, f: (f, 0)),   # W2 chunk
                pl.BlockSpec((1, h_pad), lambda i, f: (0, 0)),        # b2
            ],
            out_specs=pl.BlockSpec((tile_m, h_pad), lambda i, f: (i, 0)),
            scratch_shapes=[pltpu.VMEM((tile_m, h_pad), jnp.float32)],
        ),
        compiler_params=pltpu.CompilerParams(
            dimension_semantics=("parallel", "arbitrary"),
            vmem_limit_bytes=cfg.vmem_limit_bytes,
        ),
        cost_estimate=pl.CostEstimate(flops=flops, transcendentals=0,
                                      bytes_accessed=bytes_accessed),
    )(xp, w1p, b1p, w2p, b2p)

    return out[:m, :hidden].reshape(orig_shape)


# ----------------------------------------------------------------------------- init
def xavier_uniform(key, fan_in, fan_out, dtype=jnp.float32):
    # matches nn.init.xavier_uniform_ for a Linear weight of shape (out, in);
    # generated directly in (in, out) layout — distribution is identical.
    bound = math.sqrt(6.0 / (fan_in + fan_out))
    return jax.random.uniform(key, (fan_in, fan_out), dtype=dtype,
                              minval=-bound, maxval=bound)


if __name__ == "__main__":
    batch, seq, hidden, filter_size = 2, 8, 32, 64
    dropout_rate = 0.1  # identity at inference

    key = jax.random.PRNGKey(0)
    k_x, k_w1, k_w2, k_x2, k_w3, k_w4 = jax.random.split(key, 6)

    # deterministic parameter init (xavier-uniform weights, zero biases)
    w1 = xavier_uniform(k_w1, hidden, filter_size)        # (H, F)
    b1 = jnp.zeros((filter_size,), jnp.float32)
    w2 = xavier_uniform(k_w2, filter_size, hidden)        # (F, H)
    b2 = jnp.zeros((hidden,), jnp.float32)

    x = jax.random.normal(k_x, (batch, seq, hidden), jnp.float32)
    ref = jnp.maximum(x @ w1 + b1, 0.0) @ w2 + b2

    # ---- default path: bf16 compute, f32 accumulation ------------------------
    params_bf16, cfg_bf16 = prepare_ffn_params(w1, b1, w2, b2)   # bf16 default
    y = jax.block_until_ready(ffn_forward(x, *params_bf16, cfg=cfg_bf16))
    assert y.shape == x.shape
    assert jnp.allclose(y, ref, atol=5e-2, rtol=5e-2)

    # ---- opt-in f32 reference mode: tight check ------------------------------
    params_f32, cfg_f32 = prepare_ffn_params(
        w1, b1, w2, b2, compute_dtype=jnp.float32)
    y_f32 = jax.block_until_ready(ffn_forward(x, *params_f32, cfg=cfg_f32))
    assert jnp.allclose(y_f32, ref, atol=1e-5, rtol=1e-5)

    # ---- multi-tile path: several M tiles and F (reduction) tiles ------------
    filt2 = 320
    w3 = xavier_uniform(k_w3, hidden, filt2)
    b3 = jnp.zeros((filt2,), jnp.float32)
    w4 = xavier_uniform(k_w4, filt2, hidden)
    b4 = jnp.zeros((hidden,), jnp.float32)
    x2 = jax.random.normal(k_x2, (26, hidden), jnp.float32)      # awkward M
    ref2 = jnp.maximum(x2 @ w3 + b3, 0.0) @ w4 + b4

    params2, cfg2 = prepare_ffn_params(w3, b3, w4, b4, compute_dtype=jnp.float32,
                                       tile_f=128)               # -> 3 F tiles
    y2 = jax.block_until_ready(
        ffn_forward(x2, *params2, cfg=cfg2, tile_m=16))           # -> 2 M tiles
    assert y2.shape == x2.shape
    assert jnp.allclose(y2, ref2, atol=1e-5, rtol=1e-5)

    print("KERNEL_OK")
</pallas_src>

<mosaic_0001>
module attributes {stable_mosaic.version = 11 : i64} {
  func.func @ffn_kernel(%arg0: i32, %arg1: i32, %arg2: memref<16x128xbf16, #tpu.memory_space<vmem>>, %arg3: memref<128x128xbf16, #tpu.memory_space<vmem>>, %arg4: memref<1x128xf32, #tpu.memory_space<vmem>>, %arg5: memref<128x128xbf16, #tpu.memory_space<vmem>>, %arg6: memref<1x128xf32, #tpu.memory_space<vmem>>, %arg7: memref<16x128xf32, #tpu.memory_space<vmem>>, %arg8: memref<16x128xf32, #tpu.memory_space<vmem>>) attributes {dimension_semantics = [#tpu.dimension_semantics<parallel>, #tpu.dimension_semantics<arbitrary>], iteration_bounds = array<i64: 1, 1>, scalar_prefetch = 0 : i64, scratch_operands = 1 : i64, tpu.core_type = #tpu.core_type<tc>, window_params = [{transform_indices = @transform_0, window_bounds = array<i64: 16, 128>}, {transform_indices = @transform_1, window_bounds = array<i64: 128, 128>}, {transform_indices = @transform_2, window_bounds = array<i64: 1, 128>}, {transform_indices = @transform_3, window_bounds = array<i64: 128, 128>}, {pipeline_mode = #tpu.pipeline_mode<synchronous>, transform_indices = @transform_4, window_bounds = array<i64: 1, 128>}, {transform_indices = @transform_5, window_bounds = array<i64: 16, 128>}]} {
    %c0 = arith.constant 0 : index
    %c0_0 = arith.constant 0 : index
    %0 = vector.load %arg2[%c0, %c0_0] : memref<16x128xbf16, #tpu.memory_space<vmem>>, vector<16x128xbf16>
    %c0_1 = arith.constant 0 : index
    %c0_2 = arith.constant 0 : index
    %1 = vector.load %arg3[%c0_1, %c0_2] : memref<128x128xbf16, #tpu.memory_space<vmem>>, vector<128x128xbf16>
    %cst = arith.constant dense<0.000000e+00> : vector<16x128xf32>
    %2 = tpu.matmul %0, %1, %cst {dimension_numbers = #tpu.dot_dimension_numbers<[1], [0], [0], [1], [0, 0, 1, 1], [], []>} : vector<16x128xbf16>, vector<128x128xbf16>, vector<16x128xf32> -> vector<16x128xf32>
    %c0_3 = arith.constant 0 : index
    %c0_4 = arith.constant 0 : index
    %3 = vector.load %arg4[%c0_3, %c0_4] : memref<1x128xf32, #tpu.memory_space<vmem>>, vector<1x128xf32>
    %4 = vector.broadcast %3 : vector<1x128xf32> to vector<16x128xf32>
    %5 = arith.addf %2, %4 : vector<16x128xf32>
    %cst_5 = arith.constant 0.000000e+00 : f32
    %6 = vector.broadcast %cst_5 : f32 to vector<16x128xf32>
    %7 = arith.maximumf %5, %6 : vector<16x128xf32>
    %8 = arith.truncf %7 : vector<16x128xf32> to vector<16x128xbf16>
    %c0_6 = arith.constant 0 : index
    %c0_7 = arith.constant 0 : index
    %9 = vector.load %arg5[%c0_6, %c0_7] : memref<128x128xbf16, #tpu.memory_space<vmem>>, vector<128x128xbf16>
    %cst_8 = arith.constant dense<0.000000e+00> : vector<16x128xf32>
    %10 = tpu.matmul %8, %9, %cst_8 {dimension_numbers = #tpu.dot_dimension_numbers<[1], [0], [0], [1], [0, 0, 1, 1], [], []>} : vector<16x128xbf16>, vector<128x128xbf16>, vector<16x128xf32> -> vector<16x128xf32>
    %c0_i32 = arith.constant 0 : i32
    %11 = arith.cmpi eq, %arg1, %c0_i32 : i32
    %12 = arith.extui %11 : i1 to i32
    %c0_i32_9 = arith.constant 0 : i32
    %13 = arith.cmpi ne, %12, %c0_i32_9 : i32
    scf.if %13 {
      %c0_14 = arith.constant 0 : index
      %c0_15 = arith.constant 0 : index
      %20 = vector.load %arg8[%c0_14, %c0_15] : memref<16x128xf32, #tpu.memory_space<vmem>>, vector<16x128xf32>
      tpu.vector_store %arg8[%c0_14, %c0_15], %10 {strides = array<i32>} : memref<16x128xf32, #tpu.memory_space<vmem>>, vector<16x128xf32>,
    } else {
    }
    %c0_i32_10 = arith.constant 0 : i32
    %14 = arith.cmpi ne, %arg1, %c0_i32_10 : i32
    %15 = arith.extui %14 : i1 to i32
    %c0_i32_11 = arith.constant 0 : i32
    %16 = arith.cmpi ne, %15, %c0_i32_11 : i32
    scf.if %16 {
      %c0_14 = arith.constant 0 : index
      %c0_15 = arith.constant 0 : index
      %20 = vector.load %arg8[%c0_14, %c0_15] : memref<16x128xf32, #tpu.memory_space<vmem>>, vector<16x128xf32>
      %21 = arith.addf %20, %10 : vector<16x128xf32>
      %c0_16 = arith.constant 0 : index
      %c0_17 = arith.constant 0 : index
      %22 = vector.load %arg8[%c0_16, %c0_17] : memref<16x128xf32, #tpu.memory_space<vmem>>, vector<16x128xf32>
      tpu.vector_store %arg8[%c0_16, %c0_17], %21 {strides = array<i32>} : memref<16x128xf32, #tpu.memory_space<vmem>>, vector<16x128xf32>,
    } else {
    }
    %c0_i32_12 = arith.constant 0 : i32
    %17 = arith.cmpi eq, %arg1, %c0_i32_12 : i32
    %18 = arith.extui %17 : i1 to i32
    %c0_i32_13 = arith.constant 0 : i32
    %19 = arith.cmpi ne, %18, %c0_i32_13 : i32
    scf.if %19 {
      %c0_14 = arith.constant 0 : index
      %c0_15 = arith.constant 0 : index
      %20 = vector.load %arg8[%c0_14, %c0_15] : memref<16x128xf32, #tpu.memory_space<vmem>>, vector<16x128xf32>
      %c0_16 = arith.constant 0 : index
      %c0_17 = arith.constant 0 : index
      %21 = vector.load %arg6[%c0_16, %c0_17] : memref<1x128xf32, #tpu.memory_space<vmem>>, vector<1x128xf32>
      %22 = vector.broadcast %21 : vector<1x128xf32> to vector<16x128xf32>
      %23 = arith.addf %20, %22 : vector<16x128xf32>
      %c0_18 = arith.constant 0 : index
      %c0_19 = arith.constant 0 : index
      %24 = vector.load %arg7[%c0_18, %c0_19] : memref<16x128xf32, #tpu.memory_space<vmem>>, vector<16x128xf32>
      tpu.vector_store %arg7[%c0_18, %c0_19], %23 {strides = array<i32>} : memref<16x128xf32, #tpu.memory_space<vmem>>, vector<16x128xf32>,
    } else {
    }
    return
  }
  func.func @transform_0(%arg0: i32, %arg1: i32) -> (i32, i32) {
    %c0_i32 = arith.constant 0 : i32
    %c0_i32_0 = arith.constant 0 : i32
    return %arg0, %c0_i32 : i32, i32
  }
  func.func @transform_1(%arg0: i32, %arg1: i32) -> (i32, i32) {
    %c0_i32 = arith.constant 0 : i32
    %c0_i32_0 = arith.constant 0 : i32
    return %c0_i32, %arg1 : i32, i32
  }
  func.func @transform_2(%arg0: i32, %arg1: i32) -> (i32, i32) {
    %c0_i32 = arith.constant 0 : i32
    %c0_i32_0 = arith.constant 0 : i32
    return %c0_i32, %arg1 : i32, i32
  }
  func.func @transform_3(%arg0: i32, %arg1: i32) -> (i32, i32) {
    %c0_i32 = arith.constant 0 : i32
    %c0_i32_0 = arith.constant 0 : i32
    return %arg1, %c0_i32 : i32, i32
  }
  func.func @transform_4(%arg0: i32, %arg1: i32) -> (i32, i32) {
    %c0_i32 = arith.constant 0 : i32
    %c0_i32_0 = arith.constant 0 : i32
    %c0_i32_1 = arith.constant 0 : i32
    return %c0_i32, %c0_i32_0 : i32, i32
  }
  func.func @transform_5(%arg0: i32, %arg1: i32) -> (i32, i32) {
    %c0_i32 = arith.constant 0 : i32
    %c0_i32_0 = arith.constant 0 : i32
    return %arg0, %c0_i32 : i32, i32
  }
}

</mosaic_0001>

<llo_original>
// kernel: ffn_forward.1
$region0: #{ffn_forward.1}
  #allocation0 [shape = 'u32[]', space=smem, size = 0x4, offset = 0x4, fixed_abs, tag = 'smem constant byte address 0x4 - core index']
  #allocation1 [shape = 'u32[144,128]{1,0:T(1,128)}', space=vmem, size = 0x12000, scoped, tag = 'internal scratch']
  #allocation2 [shape = 'f32[16,128]{1,0:T(8,128)}', space=vmem, size = 0x2000, scoped, tag = 'scratch operand']
  %s0 = inlined_call_operand.hbm [shape: bf16[16,128], index: 0, kind: input, shape index: {}]
  %s1 = inlined_call_operand.hbm [shape: bf16[128,128], index: 1, kind: input, shape index: {}]
  %s2 = inlined_call_operand.hbm [shape: f32[1,128], index: 2, kind: input, shape index: {}]
  %s3 = inlined_call_operand.hbm [shape: bf16[128,128], index: 3, kind: input, shape index: {}]
  %s4 = inlined_call_operand.hbm [shape: f32[1,128], index: 4, kind: input, shape index: {}]
  %s5 = inlined_call_operand.hbm [shape: f32[16,128], index: 5, kind: output, shape index: {}]
  %s6 = sld [smem:[#allocation0]]
  $region62: #{ffn_forward.1} parent=0
    _
  %s8 = ssub.s32 1, %s6
  %s9 = scalar_select 0, %s8, %s6
  $region1: #{ffn_forward.1} parent=0
    #allocation3 [shape = 'u8[4096]{0}', space=vmem, size = 0x1000, scoped, tag = 'input window, operand 0, single buffered']
    #allocation4 [shape = 's32[1]{0}', space=sflag, size = 0x4, scoped, tag = 'scoped memory for ffn_forward.1']
    #allocation5 [shape = 's32[1]{0}', space=sflag, size = 0x4, scoped, tag = 'scoped memory for ffn_forward.1']
    #allocation6 [shape = 'u8[32768]{0}', space=vmem, size = 0x8000, scoped, tag = 'input window, operand 1, single buffered']
    #allocation7 [shape = 's32[1]{0}', space=sflag, size = 0x4, scoped, tag = 'scoped memory for ffn_forward.1']
    #allocation8 [shape = 'u8[512]{0}', space=vmem, size = 0x400, scoped, tag = 'input window, operand 2, single buffered']
    #allocation9 [shape = 'u8[32768]{0}', space=vmem, size = 0x8000, scoped, tag = 'input window, operand 3, single buffered']
    #allocation10 [shape = 's32[1]{0}', space=sflag, size = 0x4, scoped, tag = 'scoped memory for ffn_forward.1']
    #allocation11 [shape = 'u8[512]{0}', space=vmem, size = 0x400, scoped, tag = 'input window, operand 4, single buffered']
    #allocation12 [shape = 'u8[8192]{0}', space=vmem, size = 0x2000, scoped, tag = 'output window, operand 0, single buffered']
    %10 = vsyncpa [#allocation4], 0
    %11 = vsyncpa [#allocation7], 0
    %12 = vsyncpa [#allocation10], 0
    %13 = vsyncpa [#allocation5], 0
    // Predicated region
    $region2: #{ffn_forward.1} parent=1 // pred_check
      _
    $region3: #{ffn_forward.1} parent=1 // pred_check_branch
      %15 = sbr.rel (0) target = $region5
    $region4: #{ffn_forward.1} parent=1 // pred_region
      %s17 = ssub.s32 128, 128
      %18 = vsyncadd [#allocation4], %s17
      %s19 = sshll.u32 [#allocation3], 4
      %s20 = int_to_ptr.vmem [resolvable:$true] %s19
      %25 = dma.hbm_to_vmem [thread:$0]  %s0, 128, %s20, [#allocation4], 64, 64, 4
    $region5: #{ffn_forward.1} parent=1 // pred_fallthru
      _
    // Predicated region
    $region6: #{ffn_forward.1} parent=1 // pred_check
      _
    $region7: #{ffn_forward.1} parent=1 // pred_check_branch
      %27 = sbr.rel (0) target = $region9
    $region8: #{ffn_forward.1} parent=1 // pred_region
      %s29 = ssub.s32 1024, 1024
      %30 = vsyncadd [#allocation7], %s29
      %s31 = sshll.u32 [#allocation6], 4
      %s32 = int_to_ptr.vmem [resolvable:$true] %s31
      %37 = dma.hbm_to_vmem [thread:$0]  %s1, 1024, %s32, [#allocation7], 64, 64, 4
    $region9: #{ffn_forward.1} parent=1 // pred_fallthru
      _
    // Predicated region
    $region10: #{ffn_forward.1} parent=1 // pred_check
      _
    $region11: #{ffn_forward.1} parent=1 // pred_check_branch
      %39 = sbr.rel (0) target = $region13
    $region12: #{ffn_forward.1} parent=1 // pred_region
      %s41 = ssub.s32 16, 16
      %42 = vsyncadd [#allocation7], %s41
      %s44 = sshll.u32 [#allocation8], 4
      %s45 = int_to_ptr.vmem [resolvable:$true] %s44
      %47 = dma.hbm_to_vmem [thread:$0]  %s2, 16, %s45, [#allocation7]
    $region13: #{ffn_forward.1} parent=1 // pred_fallthru
      _
    // Predicated region
    $region14: #{ffn_forward.1} parent=1 // pred_check
      _
    $region15: #{ffn_forward.1} parent=1 // pred_check_branch
      %49 = sbr.rel (0) target = $region17
    $region16: #{ffn_forward.1} parent=1 // pred_region
      %s51 = ssub.s32 1024, 1024
      %52 = vsyncadd [#allocation10], %s51
      %s53 = sshll.u32 [#allocation9], 4
      %s54 = int_to_ptr.vmem [resolvable:$true] %s53
      %59 = dma.hbm_to_vmem [thread:$0]  %s3, 1024, %s54, [#allocation10], 64, 64, 4
    $region17: #{ffn_forward.1} parent=1 // pred_fallthru
      _
    // Predicated region
    $region18: #{ffn_forward.1} parent=1 // pred_check
      _
    $region19: #{ffn_forward.1} parent=1 // pred_check_branch
      %61 = sbr.rel (0) target = $region21
    $region20: #{ffn_forward.1} parent=1 // pred_region
      %s63 = ssub.s32 16, 16
      %64 = vsyncadd [#allocation10], %s63
      %s66 = sshll.u32 [#allocation11], 4
      %s67 = int_to_ptr.vmem [resolvable:$true] %s66
      %69 = dma.hbm_to_vmem [thread:$0]  %s4, 16, %s67, [#allocation10]
    $region21: #{ffn_forward.1} parent=1 // pred_fallthru
      _
    // Predicated region
    $region22: #{ffn_forward.1} parent=1 // pred_check
      _
    $region23: #{ffn_forward.1} parent=1 // pred_check_branch
      %71 = sbr.rel (0) target = $region25
    $region24: #{ffn_forward.1} parent=1 // pred_region
      %72 = dma.done [#allocation4], 128
    $region25: #{ffn_forward.1} parent=1 // pred_fallthru
      _
    // Predicated region
    $region26: #{ffn_forward.1} parent=1 // pred_check
      _
    $region27: #{ffn_forward.1} parent=1 // pred_check_branch
      %74 = sbr.rel (0) target = $region29
    $region28: #{ffn_forward.1} parent=1 // pred_region
      %75 = dma.done [#allocation7], 1024
    $region29: #{ffn_forward.1} parent=1 // pred_fallthru
      _
    // Predicated region
    $region30: #{ffn_forward.1} parent=1 // pred_check
      _
    $region31: #{ffn_forward.1} parent=1 // pred_check_branch
      %77 = sbr.rel (0) target = $region33
    $region32: #{ffn_forward.1} parent=1 // pred_region
      %78 = dma.done [#allocation7], 16
    $region33: #{ffn_forward.1} parent=1 // pred_fallthru
      _
    // Predicated region
    $region34: #{ffn_forward.1} parent=1 // pred_check
      _
    $region35: #{ffn_forward.1} parent=1 // pred_check_branch
      %80 = sbr.rel (0) target = $region37
    $region36: #{ffn_forward.1} parent=1 // pred_region
      %81 = dma.done [#allocation10], 1024
    $region37: #{ffn_forward.1} parent=1 // pred_fallthru
      _
    // Predicated region
    $region38: #{ffn_forward.1} parent=1 // pred_check
      _
    $region39: #{ffn_forward.1} parent=1 // pred_check_branch
      %83 = sbr.rel (0) target = $region41
    $region40: #{ffn_forward.1} parent=1 // pred_region
      %84 = dma.done [#allocation10], 16
    $region41: #{ffn_forward.1} parent=1 // pred_fallthru
      _
    %v86 = vld [vmem:[#allocation3] sm:$0xf]
    %v87 = vld [vmem:[#allocation3 + $0x4] sm:$0xf]
    %v88 = vld [vmem:[#allocation6] sm:$0xf]
    %v89 = vld [vmem:[#allocation6 + $0x4] sm:$0xf]
    %v90 = vld [vmem:[#allocation6 + $0x8] sm:$0xf]
    %v91 = vld [vmem:[#allocation6 + $0xc] sm:$0xf]
    %v92 = vld [vmem:[#allocation6 + $0x10] sm:$0xf]
    %v93 = vld [vmem:[#allocation6 + $0x14] sm:$0xf]
    %v94 = vld [vmem:[#allocation6 + $0x18] sm:$0xf]
    %v95 = vld [vmem:[#allocation6 + $0x1c] sm:$0xf]
    %v96 = vld [vmem:[#allocation6 + $0x20] sm:$0xf]
    %v97 = vld [vmem:[#allocation6 + $0x24] sm:$0xf]
    %v98 = vld [vmem:[#allocation6 + $0x28] sm:$0xf]
    %v99 = vld [vmem:[#allocation6 + $0x2c] sm:$0xf]
    %v100 = vld [vmem:[#allocation6 + $0x30] sm:$0xf]
    %v101 = vld [vmem:[#allocation6 + $0x34] sm:$0xf]
    %v102 = vld [vmem:[#allocation6 + $0x38] sm:$0xf]
    %v103 = vld [vmem:[#allocation6 + $0x3c] sm:$0xf]
    %v104 = vld [vmem:[#allocation8] sm:$0x1]
    %v106 = vlaneseq
    %v107 = vshrl.u32 %v106, 7
    %v108 = vsub.s32 0, %v107
    %v109 = vrot.slane %v104, %v108
    %v113 = vunpack.c.l.b16 %v86
    %v114 = vunpack.c.l.b16 %v87
    %v115 = vpack.c.b16 %v114, %v113
    %v133 = vunpack.c.l.b16 %v88
    %v134 = vunpack.c.l.b16 %v89
    %v135 = vunpack.c.l.b16 %v90
    %v136 = vunpack.c.l.b16 %v91
    %v137 = vunpack.c.l.b16 %v92
    %v138 = vunpack.c.l.b16 %v93
    %v139 = vunpack.c.l.b16 %v94
    %v140 = vunpack.c.l.b16 %v95
    %v141 = vunpack.c.l.b16 %v96
    %v142 = vunpack.c.l.b16 %v97
    %v143 = vunpack.c.l.b16 %v98
    %v144 = vunpack.c.l.b16 %v99
    %v145 = vunpack.c.l.b16 %v100
    %v146 = vunpack.c.l.b16 %v101
    %v147 = vunpack.c.l.b16 %v102
    %v148 = vunpack.c.l.b16 %v103
    %v149 = vpack.c.b16 %v134, %v133
    %v150 = vpack.c.b16 %v136, %v135
    %v151 = vpack.c.b16 %v138, %v137
    %v152 = vpack.c.b16 %v140, %v139
    %v153 = vpack.c.b16 %v142, %v141
    %v154 = vpack.c.b16 %v144, %v143
    %v155 = vpack.c.b16 %v146, %v145
    %v156 = vpack.c.b16 %v148, %v147
    %165 = vmatprep.subr.bf16.mxu0 0
    %166 = vmatpush1.bf16.msra.mxu0 %v149
    %167 = vmatprep.subr.bf16.mxu0 0
    %168 = vmatpush1.bf16.msra.mxu0 %v150
    %169 = vmatprep.subr.bf16.mxu0 0
    %170 = vmatpush1.bf16.msra.mxu0 %v151
    %171 = vmatprep.subr.bf16.mxu0 0
    %172 = vmatpush1.bf16.msra.mxu0 %v152
    %173 = vmatprep.subr.bf16.mxu0 0
    %174 = vmatpush1.bf16.msra.mxu0 %v153
    %175 = vmatprep.subr.bf16.mxu0 0
    %176 = vmatpush1.bf16.msra.mxu0 %v154
    %177 = vmatprep.subr.bf16.mxu0 0
    %178 = vmatpush1.bf16.msra.mxu0 %v155
    %179 = vmatprep.subr.bf16.mxu0 0
    %180 = vmatpush1.bf16.msra.mxu0 %v156
    %181 = vmatprep.subr.bf16.mxu0 0
    %182 = vmatpush1.bf16.msra.mxu0 0
    %183 = vmatprep.subr.bf16.mxu0 0
    %184 = vmatpush1.bf16.msra.mxu0 0
    %185 = vmatprep.subr.bf16.mxu0 0
    %186 = vmatpush1.bf16.msra.mxu0 0
    %187 = vmatprep.subr.bf16.mxu0 0
    %188 = vmatpush1.bf16.msra.mxu0 0
    %189 = vmatprep.subr.bf16.mxu0 0
    %190 = vmatpush1.bf16.msra.mxu0 0
    %191 = vmatprep.subr.bf16.mxu0 0
    %192 = vmatpush1.bf16.msra.mxu0 0
    %193 = vmatprep.subr.bf16.mxu0 0
    %194 = vmatpush1.bf16.msra.mxu0 0
    %195 = vmatprep.subr.bf16.mxu0 0
    %196 = vmatpush1.bf16.msra.mxu0 0
    %197 = vmatprep.mubr.bf16.mxu0 0
    %198 = vmatmul.mubr.bf16.gmra.mrb[0].mxu0 %v115
    %v199 = vpop.f32.mrb[0].mxu0
    %v200 = vadd.f32 %v109, %v199
    %v201 = vpop.f32.mrb[0].mxu0
    %v202 = vpop.f32.mrb[0].mxu0
    %v203 = vadd.f32 %v109, %v202
    %v204 = vpop.f32.mrb[0].mxu0
    %205 = vdwg.mxu0
    %v206 = vmax.f32 %v200, 0.0
    %v207 = vmax.f32 %v203, 0.0
    %v208 = vpack.c.bf16 %v207, %v206
    %v209 = vld [vmem:[#allocation9] sm:$0xf]
    %v210 = vld [vmem:[#allocation9 + $0x4] sm:$0xf]
    %v211 = vld [vmem:[#allocation9 + $0x8] sm:$0xf]
    %v212 = vld [vmem:[#allocation9 + $0xc] sm:$0xf]
    %v213 = vld [vmem:[#allocation9 + $0x10] sm:$0xf]
    %v214 = vld [vmem:[#allocation9 + $0x14] sm:$0xf]
    %v215 = vld [vmem:[#allocation9 + $0x18] sm:$0xf]
    %v216 = vld [vmem:[#allocation9 + $0x1c] sm:$0xf]
    %v217 = vld [vmem:[#allocation9 + $0x20] sm:$0xf]
    %v218 = vld [vmem:[#allocation9 + $0x24] sm:$0xf]
    %v219 = vld [vmem:[#allocation9 + $0x28] sm:$0xf]
    %v220 = vld [vmem:[#allocation9 + $0x2c] sm:$0xf]
    %v221 = vld [vmem:[#allocation9 + $0x30] sm:$0xf]
    %v222 = vld [vmem:[#allocation9 + $0x34] sm:$0xf]
    %v223 = vld [vmem:[#allocation9 + $0x38] sm:$0xf]
    %v224 = vld [vmem:[#allocation9 + $0x3c] sm:$0xf]
    %v241 = vunpack.c.l.b16 %v209
    %v242 = vunpack.c.l.b16 %v210
    %v243 = vunpack.c.l.b16 %v211
    %v244 = vunpack.c.l.b16 %v212
    %v245 = vunpack.c.l.b16 %v213
    %v246 = vunpack.c.l.b16 %v214
    %v247 = vunpack.c.l.b16 %v215
    %v248 = vunpack.c.l.b16 %v216
    %v249 = vunpack.c.l.b16 %v217
    %v250 = vunpack.c.l.b16 %v218
    %v251 = vunpack.c.l.b16 %v219
    %v252 = vunpack.c.l.b16 %v220
    %v253 = vunpack.c.l.b16 %v221
    %v254 = vunpack.c.l.b16 %v222
    %v255 = vunpack.c.l.b16 %v223
    %v256 = vunpack.c.l.b16 %v224
    %v257 = vpack.c.b16 %v242, %v241
    %v258 = vpack.c.b16 %v244, %v243
    %v259 = vpack.c.b16 %v246, %v245
    %v260 = vpack.c.b16 %v248, %v247
    %v261 = vpack.c.b16 %v250, %v249
    %v262 = vpack.c.b16 %v252, %v251
    %v263 = vpack.c.b16 %v254, %v253
    %v264 = vpack.c.b16 %v256, %v255
    %273 = vmatprep.subr.bf16.mxu0 0
    %274 = vmatpush1.bf16.msra.mxu0 %v257
    %275 = vmatprep.subr.bf16.mxu0 0
    %276 = vmatpush1.bf16.msra.mxu0 %v258
    %277 = vmatprep.subr.bf16.mxu0 0
    %278 = vmatpush1.bf16.msra.mxu0 %v259
    %279 = vmatprep.subr.bf16.mxu0 0
    %280 = vmatpush1.bf16.msra.mxu0 %v260
    %281 = vmatprep.subr.bf16.mxu0 0
    %282 = vmatpush1.bf16.msra.mxu0 %v261
    %283 = vmatprep.subr.bf16.mxu0 0
    %284 = vmatpush1.bf16.msra.mxu0 %v262
    %285 = vmatprep.subr.bf16.mxu0 0
    %286 = vmatpush1.bf16.msra.mxu0 %v263
    %287 = vmatprep.subr.bf16.mxu0 0
    %288 = vmatpush1.bf16.msra.mxu0 %v264
    %289 = vmatprep.subr.bf16.mxu0 0
    %290 = vmatpush1.bf16.msra.mxu0 0
    %291 = vmatprep.subr.bf16.mxu0 0
    %292 = vmatpush1.bf16.msra.mxu0 0
    %293 = vmatprep.subr.bf16.mxu0 0
    %294 = vmatpush1.bf16.msra.mxu0 0
    %295 = vmatprep.subr.bf16.mxu0 0
    %296 = vmatpush1.bf16.msra.mxu0 0
    %297 = vmatprep.subr.bf16.mxu0 0
    %298 = vmatpush1.bf16.msra.mxu0 0
    %299 = vmatprep.subr.bf16.mxu0 0
    %300 = vmatpush1.bf16.msra.mxu0 0
    %301 = vmatprep.subr.bf16.mxu0 0
    %302 = vmatpush1.bf16.msra.mxu0 0
    %303 = vmatprep.subr.bf16.mxu0 0
    %304 = vmatpush1.bf16.msra.mxu0 0
    %305 = vmatprep.mubr.bf16.mxu0 0
    %306 = vmatmul.mubr.bf16.gmra.mrb[0].mxu0 %v208
    %v307 = vpop.f32.mrb[0].mxu0
    %v308 = vadd.f32 0.0, %v307
    %v309 = vpop.f32.mrb[0].mxu0
    %v310 = vpop.f32.mrb[0].mxu0
    %v311 = vadd.f32 0.0, %v310
    %v312 = vpop.f32.mrb[0].mxu0
    %313 = vdwg.mxu0
    %p314 = scmp.eq.s32.totalorder 0, 0
    // Predicated region
    $region42: #{ffn_forward.1} parent=1 // pred_check
      %p315 = pneg %p314
    $region43: #{ffn_forward.1} parent=1 // pred_check_branch
      %317 = sbr.rel (%p315) target = $region45
    $region44: #{ffn_forward.1} parent=1 // pred_region
      %318 = vst [vmem:[#allocation2] sm:$0xff] %v308
      %319 = vst [vmem:[#allocation2 + $0x8] sm:$0xff] %v311
    $region45: #{ffn_forward.1} parent=1 // pred_fallthru
      _
    %p320 = scmp.ne.s32.totalorder 0, 0
    // Predicated region
    $region46: #{ffn_forward.1} parent=1 // pred_check
      %p321 = pneg %p320
    $region47: #{ffn_forward.1} parent=1 // pred_check_branch
      %323 = sbr.rel (%p321) target = $region49
    $region48: #{ffn_forward.1} parent=1 // pred_region
      %v324 = vld [vmem:[#allocation2] sm:$0xff]
      %v325 = vld [vmem:[#allocation2 + $0x8] sm:$0xff]
      %v326 = vadd.f32 %v324, %v308
      %v327 = vadd.f32 %v325, %v311
      %328 = vst [vmem:[#allocation2] sm:$0xff] %v326
      %329 = vst [vmem:[#allocation2 + $0x8] sm:$0xff] %v327
    $region49: #{ffn_forward.1} parent=1 // pred_fallthru
      _
    // Predicated region
    $region50: #{ffn_forward.1} parent=1 // pred_check
      %p330 = pneg %p314
    $region51: #{ffn_forward.1} parent=1 // pred_check_branch
      %332 = sbr.rel (%p330) target = $region53
    $region52: #{ffn_forward.1} parent=1 // pred_region
      %v333 = vld [vmem:[#allocation2] sm:$0xff]
      %v334 = vld [vmem:[#allocation2 + $0x8] sm:$0xff]
      %v335 = vld [vmem:[#allocation11] sm:$0x1]
      %v337 = vlaneseq
      %v338 = vshrl.u32 %v337, 7
      %v339 = vsub.s32 0, %v338
      %v340 = vrot.slane %v335, %v339
      %v342 = vadd.f32 %v333, %v340
      %v343 = vadd.f32 %v334, %v340
      %344 = vst [vmem:[#allocation12] sm:$0xff] %v342
      %345 = vst [vmem:[#allocation12 + $0x8] sm:$0xff] %v343
    $region53: #{ffn_forward.1} parent=1 // pred_fallthru
      _
    // Predicated region
    $region54: #{ffn_forward.1} parent=1 // pred_check
      _
    $region55: #{ffn_forward.1} parent=1 // pred_check_branch
      %347 = sbr.rel (0) target = $region57
    $region56: #{ffn_forward.1} parent=1 // pred_region
      %s349 = ssub.s32 256, 256
      %350 = vsyncadd [#allocation5], %s349
      %s351 = sshll.u32 [#allocation12], 4
      %s352 = int_to_ptr.vmem [resolvable:$true] %s351
      %357 = dma.vmem_to_hbm [thread:$0]  %s352, 256, %s5, [#allocation5], 128, 128, 8
    $region57: #{ffn_forward.1} parent=1 // pred_fallthru
      _
    // Predicated region
    $region58: #{ffn_forward.1} parent=1 // pred_check
      _
    $region59: #{ffn_forward.1} parent=1 // pred_check_branch
      %359 = sbr.rel (0) target = $region61
    $region60: #{ffn_forward.1} parent=1 // pred_region
      %360 = dma.done [#allocation5], 256
    $region61: #{ffn_forward.1} parent=1 // pred_fallthru
      _
    %361 = vsyncpa [#allocation4], 1
    %362 = vsyncpa [#allocation7], 1
    %363 = vsyncpa [#allocation10], 1
    %364 = vsyncpa [#allocation5], 1

</llo_original>
